<compile_context>
chip_gen: v7x
topology: tpu7x:2x2x1
jax: 0.10.0
libtpu: 0.0.40
codegen_flags: <defaults>
</compile_context>

<pallas_src>
import numpy as np
import jax
import jax.numpy as jnp
from jax import lax
from jax.experimental import pallas as pl
from jax.experimental.pallas import tpu as pltpu


_TINY_ELEMS = 8192  # below this, let XLA fuse the 3-5 tap stencil


def gaussian_taps(window: int, sigma: float):
    """Exactly mirrors Kernel.gaussian() (note |x|, not x^2 — intentional)."""
    half = int(window - 1) / 2
    sigma2 = np.float32(sigma) * np.float32(sigma)
    x = np.arange(-half, half + 1, dtype=np.float32)
    phi = np.exp(np.float32(-0.5) * np.abs(x) / sigma2).astype(np.float32)
    phi = (phi / phi.sum(dtype=np.float32)).astype(np.float32)
    return [float(v) for v in phi]


def _smooth_ref(factor, taps):
    """Pure-JAX reference / tiny-input fast path (same math as F.conv2d pad=(pad,0))."""
    rows, _ = factor.shape
    window = len(taps)
    pad = (window - 1) // 2
    xp = jnp.pad(factor.astype(jnp.float32), ((pad, pad), (0, 0)))
    out = taps[0] * xp[0:rows, :]
    for k in range(1, window):
        out = out + taps[k] * xp[k:k + rows, :]
    return out.astype(factor.dtype)


# ------------------------- generation-aware budgets -------------------------

def _vmem_budget():
    """Returns (per-step block budget, vmem_limit_bytes) for this TPU generation."""
    try:
        cap = pltpu.get_tpu_info().vmem_capacity_bytes
    except Exception:
        cap = 128 * 1024 * 1024
    if cap <= 64 * 1024 * 1024:                    # v7x-class core: 64 MiB physical VMEM
        return 12 * 1024 * 1024, 32 * 1024 * 1024
    return 20 * 1024 * 1024, 64 * 1024 * 1024      # v5e / v6e: 128 MiB physical VMEM


# ------------------- wide path: natural layout, col >= 128 -------------------

def _make_row_stencil_kernel(taps, rows):
    """Direct layout (time on sublanes, column tile on lanes); full time axis per block."""
    window = len(taps)
    pad = (window - 1) // 2

    def kernel(x_ref, o_ref):
        x = x_ref[...].astype(jnp.float32)                  # (rows, ct)
        ct = x.shape[1]
        acc = taps[pad] * x
        for d in range(1, pad + 1):
            z = jnp.zeros((d, ct), jnp.float32)
            # out[i] += taps[pad+d] * x[i+d]   (zero past the bottom edge)
            acc = acc + taps[pad + d] * jnp.concatenate([x[d:, :], z], axis=0)
            # out[i] += taps[pad-d] * x[i-d]   (zero past the top edge)
            acc = acc + taps[pad - d] * jnp.concatenate([z, x[:rows - d, :]], axis=0)
        o_ref[...] = acc.astype(o_ref.dtype)

    return kernel


def _pick_col_tile(rows, col, itemsize, budget):
    # dbl-buffered in/out tiles + f32 in-kernel temporaries, per column of the tile
    per_col = rows * (4 * itemsize + 24)
    tile = (budget // max(per_col, 1)) // 128 * 128
    tile = max(128, tile)
    if col >= 256:                                  # keep >= 2 grid steps (megacore / v7x)
        tile = min(tile, max(128, pl.cdiv(pl.cdiv(col, 2), 128) * 128))
    if tile >= col:
        return col
    return tile


def _smooth_wide(factor, taps, vmem_limit, col_tile):
    rows, col = factor.shape
    grid = (pl.cdiv(col, col_tile),)
    return pl.pallas_call(
        _make_row_stencil_kernel(taps, rows),
        out_shape=jax.ShapeDtypeStruct((rows, col), factor.dtype),
        grid=grid,
        in_specs=[pl.BlockSpec((rows, col_tile), lambda j: (0, j))],
        out_specs=pl.BlockSpec((rows, col_tile), lambda j: (0, j)),
        compiler_params=pltpu.CompilerParams(
            dimension_semantics=("parallel",), vmem_limit_bytes=vmem_limit),
    )(factor)


# ------ lane-dense path: transposed layout, time on lanes, halo-tiled time ------

def _make_lane_stencil_tiled(taps, T, rt):
    """Transposed layout (col on sublanes, time on lanes), halo-tiled time axis.

    Each step reads its (cs, rt) center tile plus the neighboring 128-lane
    blocks of the same array; out-of-array halo lanes are zeroed with iota
    masks every step (never gated on program_id==0, so 'parallel' sharding
    across cores is safe)."""
    window = len(taps)
    pad = (window - 1) // 2
    needs_center_mask = (T % rt) != 0

    def kernel(xc_ref, xl_ref, xr_ref, o_ref):
        j = pl.program_id(1)
        t0 = j * rt
        cs = xc_ref.shape[0]

        xc = xc_ref[...].astype(jnp.float32)                        # times [t0, t0+rt)
        if needs_center_mask:                                       # last tile may be partial
            tc = t0 + lax.broadcasted_iota(jnp.int32, (cs, rt), 1)
            xc = jnp.where(tc < T, xc, 0.0)

        # 128-lane halo blocks; only the `pad` lanes adjacent to the center tile
        # are actually consumed by the stencil slices below.
        xl = xl_ref[...].astype(jnp.float32)                        # times [t0-128, t0)
        tl = (t0 - 128) + lax.broadcasted_iota(jnp.int32, (cs, 128), 1)
        xl = jnp.where(tl >= 0, xl, 0.0)

        xr = xr_ref[...].astype(jnp.float32)                        # times [t0+rt, t0+rt+128)
        tr = (t0 + rt) + lax.broadcasted_iota(jnp.int32, (cs, 128), 1)
        xr = jnp.where(tr < T, xr, 0.0)

        xp = jnp.concatenate([xl, xc, xr], axis=1)                  # (cs, rt + 256)
        acc = taps[0] * xp[:, 128 - pad:128 - pad + rt]
        for k in range(1, window):
            acc = acc + taps[k] * xp[:, 128 - pad + k:128 - pad + k + rt]
        o_ref[...] = acc.astype(o_ref.dtype)

    return kernel


def _pick_time_tile(T, cs, itemsize, budget):
    per_lane = cs * (4 * itemsize + 24)
    rt = (budget // max(per_lane, 1)) // 128 * 128
    rt = max(128, rt)
    # keep >= 2 time steps so v7x's second TensorCore participates
    rt = min(rt, max(128, pl.cdiv(pl.cdiv(T, 2), 128) * 128))
    return rt


def _smooth_lane_dense(factor, taps, vmem_limit, budget):
    """Narrow-rank (or very long-time) factors: process factor.T so time is lane-dense."""
    rows, col = factor.shape
    itemsize = jnp.dtype(factor.dtype).itemsize
    pad = (len(taps) - 1) // 2
    T = rows
    assert T > 128 and pad <= 128

    xt = factor.T                                   # (col, T) — time on lanes
    cs = col if col <= 1024 else 512                # sublane tile (full or multiple of 8)
    nc = pl.cdiv(col, cs)
    rt = _pick_time_tile(T, cs, itemsize, budget)   # lane tile, multiple of 128, < T
    nb = rt // 128                                  # 128-lane blocks per center tile
    nlb = pl.cdiv(T, 128)                           # total 128-lane blocks along time
    nt = pl.cdiv(T, rt)

    out_t = pl.pallas_call(
        _make_lane_stencil_tiled(taps, T, rt),
        out_shape=jax.ShapeDtypeStruct((col, T), factor.dtype),
        grid=(nc, nt),
        in_specs=[
            # center tile
            pl.BlockSpec((cs, rt), lambda i, j: (i, j)),
            # left 128-lane halo block (clamped at the array start; masked in-kernel)
            pl.BlockSpec((cs, 128), lambda i, j: (i, jnp.maximum(j * nb - 1, 0))),
            # right 128-lane halo block (clamped at the array end; masked in-kernel)
            pl.BlockSpec((cs, 128), lambda i, j: (i, jnp.minimum(j * nb + nb, nlb - 1))),
        ],
        out_specs=pl.BlockSpec((cs, rt), lambda i, j: (i, j)),
        compiler_params=pltpu.CompilerParams(
            dimension_semantics=("parallel", "parallel"), vmem_limit_bytes=vmem_limit),
    )(xt, xt, xt)
    return out_t.T


# --------------------------------- wrapper ---------------------------------

def kernel_smooth(factor, window, sigma: float = 0.5, *, col_tile=None):
    """Pallas-backed equivalent of Kernel(window, density, sigma).forward(factor)."""
    assert window % 2 == 1, "odd window required (matches the same-size conv of Kernel)"
    rows, col = factor.shape
    pad = (window - 1) // 2
    taps = gaussian_taps(window, sigma)

    if window == 1:
        return factor
    # Tiny / degenerate factors (e.g. the canonical time=16, rank=8 case): a
    # dedicated custom call would be pure launch + grid-step overhead.
    if rows * col <= _TINY_ELEMS or rows <= pad:
        return _smooth_ref(factor, taps)

    budget, vmem_limit = _vmem_budget()
    itemsize = jnp.dtype(factor.dtype).itemsize

    if col >= 128:
        per_col = rows * (4 * itemsize + 24)
        if per_col * 128 <= budget:                 # full time axis fits one block
            ct = col_tile if col_tile is not None else _pick_col_tile(rows, col, itemsize, budget)
            return _smooth_wide(factor, taps, vmem_limit, ct)
        # else: time axis too long for a full-row block -> fall through to the
        # halo-tiled lane-dense path (costs one transpose each way).
    elif rows <= 128:
        return _smooth_ref(factor, taps)            # small narrow factor: XLA fuses fine
    return _smooth_lane_dense(factor, taps, vmem_limit, budget)


if __name__ == "__main__":
    sigma = 0.5
    k1, k2, k3 = jax.random.split(jax.random.PRNGKey(0), 3)

    # Case 1: canonical tatd temporal factor (time=16, rank=8) -> fused fast path.
    w1 = 3
    f1 = jax.random.normal(k1, (16, 8), dtype=jnp.float32)
    o1 = jax.block_until_ready(kernel_smooth(f1, w1, sigma))
    np.testing.assert_allclose(np.asarray(o1),
                               np.asarray(_smooth_ref(f1, gaussian_taps(w1, sigma))),
                               rtol=1e-5, atol=1e-5)

    # Case 2: narrow-rank, longer time axis -> transposed lane-dense Pallas path
    # with halo-tiled time (2 parallel time steps, partial last tile -> masking).
    w2 = 5
    f2 = jax.random.normal(k2, (1000, 32), dtype=jnp.float32)
    o2 = jax.block_until_ready(kernel_smooth(f2, w2, sigma))
    np.testing.assert_allclose(np.asarray(o2),
                               np.asarray(_smooth_ref(f2, gaussian_taps(w2, sigma))),
                               rtol=1e-5, atol=1e-5)

    # Case 3: wide bf16 factor -> direct-layout Pallas path with a parallel
    # column-tile grid (auto-split into >= 2 tiles).
    w3 = 5
    f3 = jax.random.normal(k3, (256, 384), dtype=jnp.float32).astype(jnp.bfloat16)
    o3 = jax.block_until_ready(kernel_smooth(f3, w3, sigma))
    r3 = _smooth_ref(f3, gaussian_taps(w3, sigma))
    np.testing.assert_allclose(np.asarray(o3.astype(jnp.float32)),
                               np.asarray(r3.astype(jnp.float32)),
                               rtol=2e-2, atol=2e-2)

    print("KERNEL_OK")
</pallas_src>

<mosaic_0001>
module attributes {stable_mosaic.version = 11 : i64} {
  func.func @kernel(%arg0: i32, %arg1: i32, %arg2: memref<32x512xf32, #tpu.memory_space<vmem>>, %arg3: memref<32x128xf32, #tpu.memory_space<vmem>>, %arg4: memref<32x128xf32, #tpu.memory_space<vmem>>, %arg5: memref<32x512xf32, #tpu.memory_space<vmem>>) attributes {dimension_semantics = [#tpu.dimension_semantics<parallel>, #tpu.dimension_semantics<parallel>], iteration_bounds = array<i64: 1, 2>, scalar_prefetch = 0 : i64, scratch_operands = 0 : i64, tpu.core_type = #tpu.core_type<tc>, window_params = [{transform_indices = @transform_0, window_bounds = array<i64: 32, 512>}, {transform_indices = @transform_1, window_bounds = array<i64: 32, 128>}, {transform_indices = @transform_2, window_bounds = array<i64: 32, 128>}, {transform_indices = @transform_3, window_bounds = array<i64: 32, 512>}]} {
    %c512_i32 = arith.constant 512 : i32
    %0 = arith.muli %arg1, %c512_i32 : i32
    %c0 = arith.constant 0 : index
    %c0_0 = arith.constant 0 : index
    %1 = vector.load %arg2[%c0, %c0_0] : memref<32x512xf32, #tpu.memory_space<vmem>>, vector<32x512xf32>
    %2 = tpu.iota {dimensions = array<i32: 1>} : vector<32x512xi32>
    %3 = vector.broadcast %0 : i32 to vector<32x512xi32>
    %4 = arith.addi %3, %2 : vector<32x512xi32>
    %c1000_i32 = arith.constant 1000 : i32
    %5 = vector.broadcast %c1000_i32 : i32 to vector<32x512xi32>
    %6 = arith.cmpi slt, %4, %5 : vector<32x512xi32>
    %cst = arith.constant 0.000000e+00 : f32
    %7 = vector.broadcast %cst : f32 to vector<32x512xf32>
    %8 = arith.select %6, %1, %7 : vector<32x512xi1>, vector<32x512xf32>
    %c0_1 = arith.constant 0 : index
    %c0_2 = arith.constant 0 : index
    %9 = vector.load %arg3[%c0_1, %c0_2] : memref<32x128xf32, #tpu.memory_space<vmem>>, vector<32x128xf32>
    %c128_i32 = arith.constant 128 : i32
    %10 = arith.subi %0, %c128_i32 : i32
    %11 = tpu.iota {dimensions = array<i32: 1>} : vector<32x128xi32>
    %12 = vector.broadcast %10 : i32 to vector<32x128xi32>
    %13 = arith.addi %12, %11 : vector<32x128xi32>
    %c0_i32 = arith.constant 0 : i32
    %14 = vector.broadcast %c0_i32 : i32 to vector<32x128xi32>
    %15 = arith.cmpi sge, %13, %14 : vector<32x128xi32>
    %cst_3 = arith.constant 0.000000e+00 : f32
    %16 = vector.broadcast %cst_3 : f32 to vector<32x128xf32>
    %17 = arith.select %15, %9, %16 : vector<32x128xi1>, vector<32x128xf32>
    %c0_4 = arith.constant 0 : index
    %c0_5 = arith.constant 0 : index
    %18 = vector.load %arg4[%c0_4, %c0_5] : memref<32x128xf32, #tpu.memory_space<vmem>>, vector<32x128xf32>
    %c512_i32_6 = arith.constant 512 : i32
    %19 = arith.addi %0, %c512_i32_6 : i32
    %20 = tpu.iota {dimensions = array<i32: 1>} : vector<32x128xi32>
    %21 = vector.broadcast %19 : i32 to vector<32x128xi32>
    %22 = arith.addi %21, %20 : vector<32x128xi32>
    %c1000_i32_7 = arith.constant 1000 : i32
    %23 = vector.broadcast %c1000_i32_7 : i32 to vector<32x128xi32>
    %24 = arith.cmpi slt, %22, %23 : vector<32x128xi32>
    %cst_8 = arith.constant 0.000000e+00 : f32
    %25 = vector.broadcast %cst_8 : f32 to vector<32x128xf32>
    %26 = arith.select %24, %18, %25 : vector<32x128xi1>, vector<32x128xf32>
    %27 = tpu.concatenate %17, %8, %26 in 1 : vector<32x128xf32>, vector<32x512xf32>, vector<32x128xf32> -> vector<32x768xf32>
    %28 = vector.extract_strided_slice %27 {offsets = [0, 126], sizes = [32, 512], strides = [1, 1]} : vector<32x768xf32> to vector<32x512xf32>
    %cst_9 = arith.constant 0.0140102599 : f32
    %29 = vector.broadcast %cst_9 : f32 to vector<32x512xf32>
    %30 = arith.mulf %29, %28 : vector<32x512xf32>
    %31 = vector.extract_strided_slice %27 {offsets = [0, 127], sizes = [32, 512], strides = [1, 1]} : vector<32x768xf32> to vector<32x512xf32>
    %cst_10 = arith.constant 0.103522591 : f32
    %32 = vector.broadcast %cst_10 : f32 to vector<32x512xf32>
    %33 = arith.mulf %32, %31 : vector<32x512xf32>
    %34 = arith.addf %30, %33 : vector<32x512xf32>
    %35 = vector.extract_strided_slice %27 {offsets = [0, 128], sizes = [32, 512], strides = [1, 1]} : vector<32x768xf32> to vector<32x512xf32>
    %cst_11 = arith.constant 0.764934241 : f32
    %36 = vector.broadcast %cst_11 : f32 to vector<32x512xf32>
    %37 = arith.mulf %36, %35 : vector<32x512xf32>
    %38 = arith.addf %34, %37 : vector<32x512xf32>
    %39 = vector.extract_strided_slice %27 {offsets = [0, 129], sizes = [32, 512], strides = [1, 1]} : vector<32x768xf32> to vector<32x512xf32>
    %cst_12 = arith.constant 0.103522591 : f32
    %40 = vector.broadcast %cst_12 : f32 to vector<32x512xf32>
    %41 = arith.mulf %40, %39 : vector<32x512xf32>
    %42 = arith.addf %38, %41 : vector<32x512xf32>
    %43 = vector.extract_strided_slice %27 {offsets = [0, 130], sizes = [32, 512], strides = [1, 1]} : vector<32x768xf32> to vector<32x512xf32>
    %cst_13 = arith.constant 0.0140102599 : f32
    %44 = vector.broadcast %cst_13 : f32 to vector<32x512xf32>
    %45 = arith.mulf %44, %43 : vector<32x512xf32>
    %46 = arith.addf %42, %45 : vector<32x512xf32>
    %c0_14 = arith.constant 0 : index
    %c0_15 = arith.constant 0 : index
    %47 = vector.load %arg5[%c0_14, %c0_15] : memref<32x512xf32, #tpu.memory_space<vmem>>, vector<32x512xf32>
    tpu.vector_store %arg5[%c0_14, %c0_15], %46 {strides = array<i32>} : memref<32x512xf32, #tpu.memory_space<vmem>>, vector<32x512xf32>,
    return
  }
  func.func @transform_0(%arg0: i32, %arg1: i32) -> (i32, i32) {
    %c0_i32 = arith.constant 0 : i32
    return %arg0, %arg1 : i32, i32
  }
  func.func @transform_1(%arg0: i32, %arg1: i32) -> (i32, i32) {
    %c4_i32 = arith.constant 4 : i32
    %0 = arith.muli %arg1, %c4_i32 : i32
    %c1_i32 = arith.constant 1 : i32
    %1 = arith.subi %0, %c1_i32 : i32
    %c0_i32 = arith.constant 0 : i32
    %2 = arith.maxsi %1, %c0_i32 : i32
    %c0_i32_0 = arith.constant 0 : i32
    return %arg0, %2 : i32, i32
  }
  func.func @transform_2(%arg0: i32, %arg1: i32) -> (i32, i32) {
    %c4_i32 = arith.constant 4 : i32
    %0 = arith.muli %arg1, %c4_i32 : i32
    %c4_i32_0 = arith.constant 4 : i32
    %1 = arith.addi %0, %c4_i32_0 : i32
    %c7_i32 = arith.constant 7 : i32
    %2 = arith.minsi %1, %c7_i32 : i32
    %c0_i32 = arith.constant 0 : i32
    return %arg0, %2 : i32, i32
  }
  func.func @transform_3(%arg0: i32, %arg1: i32) -> (i32, i32) {
    %c0_i32 = arith.constant 0 : i32
    return %arg0, %arg1 : i32, i32
  }
}

</mosaic_0001>

<llo_original>
// kernel: tpu_custom_call.1
$region0: #{tpu_custom_call.1}
  #allocation0 [shape = 'u32[]', space=smem, size = 0x4, offset = 0x4, fixed_abs, tag = 'smem constant byte address 0x4 - core index']
  #allocation1 [shape = 'u32[144,128]{1,0:T(1,128)}', space=vmem, size = 0x12000, scoped, tag = 'internal scratch']
  %s0 = inlined_call_operand.hbm [shape: f32[32,1000], index: 0, kind: input, shape index: {}]
  %s1 = inlined_call_operand.hbm [shape: f32[32,1000], index: 1, kind: input, shape index: {}]
  %s2 = inlined_call_operand.hbm [shape: f32[32,1000], index: 2, kind: input, shape index: {}]
  %s3 = inlined_call_operand.hbm [shape: f32[32,1000], index: 3, kind: output, shape index: {}]
  %s4 = sld [smem:[#allocation0]]
  $region57: #{tpu_custom_call.1} parent=0
    _
  %s6 = ssub.s32 1, %s4
  %s7 = scalar_select 0, %s6, %s4
  $region1: #{tpu_custom_call.1} parent=0
    #allocation2 [shape = 'u8[131072]{0}', space=vmem, size = 0x20000, scoped, tag = 'input window, operand 0']
    #allocation3 [shape = 's32[2]{0}', space=sflag, size = 0x8, scoped, tag = 'scoped memory for tpu_custom_call.1']
    #allocation4 [shape = 's32[2]{0}', space=sflag, size = 0x8, scoped, tag = 'scoped memory for tpu_custom_call.1']
    #allocation5 [shape = 'u8[32768]{0}', space=vmem, size = 0x8000, scoped, tag = 'input window, operand 1']
    #allocation6 [shape = 's32[2]{0}', space=sflag, size = 0x8, scoped, tag = 'scoped memory for tpu_custom_call.1']
    #allocation7 [shape = 'u8[32768]{0}', space=vmem, size = 0x8000, scoped, tag = 'input window, operand 2']
    #allocation8 [shape = 'u8[131072]{0}', space=vmem, size = 0x20000, scoped, tag = 'output window, operand 0']
    %8 = vsyncpa [#allocation3], 0
    %s9 = scalar_lea.sflag [#allocation3], 1
    %10 = vsyncpa %s9, 0
    %11 = vsyncpa [#allocation6], 0
    %s12 = scalar_lea.sflag [#allocation6], 1
    %13 = vsyncpa %s12, 0
    %14 = vsyncpa [#allocation4], 0
    %s15 = scalar_lea.sflag [#allocation4], 1
    %16 = vsyncpa %s15, 0
    loop: start=0, step=1, limit=4
    $region2: #{tpu_custom_call.1} parent=1 // loop_pre_header
      _
    $region3: #{tpu_custom_call.1} parent=1 // loop_header
      %s18 = sphi 0, %s22
      %p19 = scmp.ge.s32.totalorder %s18, 4
      %s25 = sphi 0, %s37
      %s26 = sphi 0, %s33
      %s27 = sphi 0, %s25
      %s28 = sphi 0, %s26
      %s29 = sphi 0, %s27
      %s30 = sphi 0, %s28
      %s42 = sphi 0, %s44
      %s45 = sphi 0, %s42
      %s46 = sphi 0, %s45
      %s62 = sphi 0, %s46
      %s78 = sphi 0, %s80
      %s81 = sphi 0, %s78
      %s82 = sphi 0, %s81
      %s98 = sphi 0, %s82
      %s114 = sphi 0, %s116
      %s117 = sphi 0, %s114
      %s118 = sphi 0, %s117
      %s134 = sphi 0, %s118
      %s142 = sphi 0, %s144
      %s145 = sphi 0, %s142
      %s146 = sphi 0, %s145
      %s162 = sphi 0, %s146
    $region4: #{tpu_custom_call.1} parent=1 // loop_header_branch
      %21 = sbr.rel (%p19) target = $region8
    $region5: #{tpu_custom_call.1} parent=1 // loop_body
      %s23 = ssub.s32 %s18, 1
      %s24 = ssub.s32 %s18, 2
      %s31 = sadd.s32 1, %s26
      %p32 = scmp.ge.s32.totalorder %s31, 2
      %s33 = scalar_select %p32, 0, %s31
      %s34 = sadd.s32 1, %s25
      %s35 = scalar_select %p32, %s34, %s25
      %p36 = scmp.ge.s32.totalorder %s35, 1
      %s37 = scalar_select %p36, 0, %s35
      %s38 = ssub.s32 %s25, %s37
      %s39 = ssub.s32 %s26, %s33
      %s40 = sor.u32 %s38, %s39
      %p41 = scmp.eq.s32.totalorder %s40, 0
      %s43 = sadd.s32 %s42, 1
      %s44 = scalar_select %p41, %s42, %s43
      %p47 = pneg %p41
      %p48 = scmp.eq.s32.totalorder %s18, 1
      %p49 = por %p47, %p48
      %p50 = scmp.ne.s32.totalorder %s42, %s45
      %p51 = scmp.eq.s32.totalorder %s18, 0
      %p52 = por %p50, %p51
      %p53 = scmp.ne.s32.totalorder %s42, %s45
      %p54 = scmp.eq.s32.totalorder %s23, 1
      %p55 = por %p53, %p54
      %p56 = scmp.ne.s32.totalorder %s45, %s46
      %p57 = scmp.eq.s32.totalorder %s23, 0
      %p58 = por %p56, %p57
      %p59 = scmp.ne.s32.totalorder %s45, %s46
      %p60 = scmp.eq.s32.totalorder %s24, 1
      %p61 = por %p59, %p60
      %p63 = scmp.ne.s32.totalorder %s46, %s62
      %p64 = scmp.eq.s32.totalorder %s24, 0
      %p65 = por %p63, %p64
      %s66 = smul.u32 %s26, 4
      %s67 = ssub.s32 %s66, 1
      %p68 = scmp.gt.s32.totalorder %s67, 0
      %s69 = scalar_select %p68, %s67, 0
      %s70 = smul.u32 %s33, 4
      %s71 = ssub.s32 %s70, 1
      %p72 = scmp.gt.s32.totalorder %s71, 0
      %s73 = scalar_select %p72, %s71, 0
      %s74 = ssub.s32 %s25, %s37
      %s75 = ssub.s32 %s69, %s73
      %s76 = sor.u32 %s74, %s75
      %p77 = scmp.eq.s32.totalorder %s76, 0
      %s79 = sadd.s32 %s78, 1
      %s80 = scalar_select %p77, %s78, %s79
      %p83 = pneg %p77
      %p84 = scmp.eq.s32.totalorder %s18, 1
      %p85 = por %p83, %p84
      %p86 = scmp.ne.s32.totalorder %s78, %s81
      %p87 = scmp.eq.s32.totalorder %s18, 0
      %p88 = por %p86, %p87
      %p89 = scmp.ne.s32.totalorder %s78, %s81
      %p90 = scmp.eq.s32.totalorder %s23, 1
      %p91 = por %p89, %p90
      %p92 = scmp.ne.s32.totalorder %s81, %s82
      %p93 = scmp.eq.s32.totalorder %s23, 0
      %p94 = por %p92, %p93
      %p95 = scmp.ne.s32.totalorder %s81, %s82
      %p96 = scmp.eq.s32.totalorder %s24, 1
      %p97 = por %p95, %p96
      %p99 = scmp.ne.s32.totalorder %s82, %s98
      %p100 = scmp.eq.s32.totalorder %s24, 0
      %p101 = por %p99, %p100
      %s102 = smul.u32 %s26, 4
      %s103 = sadd.s32 %s102, 4
      %p104 = scmp.lt.s32.totalorder %s103, 7
      %s105 = scalar_select %p104, %s103, 7
      %s106 = smul.u32 %s33, 4
      %s107 = sadd.s32 %s106, 4
      %p108 = scmp.lt.s32.totalorder %s107, 7
      %s109 = scalar_select %p108, %s107, 7
      %s110 = ssub.s32 %s25, %s37
      %s111 = ssub.s32 %s105, %s109
      %s112 = sor.u32 %s110, %s111
      %p113 = scmp.eq.s32.totalorder %s112, 0
      %s115 = sadd.s32 %s114, 1
      %s116 = scalar_select %p113, %s114, %s115
      %p119 = pneg %p113
      %p120 = scmp.eq.s32.totalorder %s18, 1
      %p121 = por %p119, %p120
      %p122 = scmp.ne.s32.totalorder %s114, %s117
      %p123 = scmp.eq.s32.totalorder %s18, 0
      %p124 = por %p122, %p123
      %p125 = scmp.ne.s32.totalorder %s114, %s117
      %p126 = scmp.eq.s32.totalorder %s23, 1
      %p127 = por %p125, %p126
      %p128 = scmp.ne.s32.totalorder %s117, %s118
      %p129 = scmp.eq.s32.totalorder %s23, 0
      %p130 = por %p128, %p129
      %p131 = scmp.ne.s32.totalorder %s117, %s118
      %p132 = scmp.eq.s32.totalorder %s24, 1
      %p133 = por %p131, %p132
      %p135 = scmp.ne.s32.totalorder %s118, %s134
      %p136 = scmp.eq.s32.totalorder %s24, 0
      %p137 = por %p135, %p136
      %s138 = ssub.s32 %s25, %s37
      %s139 = ssub.s32 %s26, %s33
      %s140 = sor.u32 %s138, %s139
      %p141 = scmp.eq.s32.totalorder %s140, 0
      %s143 = sadd.s32 %s142, 1
      %s144 = scalar_select %p141, %s142, %s143
      %p147 = pneg %p141
      %p148 = scmp.eq.s32.totalorder %s18, 1
      %p149 = por %p147, %p148
      %p150 = scmp.ne.s32.totalorder %s142, %s145
      %p151 = scmp.eq.s32.totalorder %s18, 0
      %p152 = por %p150, %p151
      %p153 = scmp.ne.s32.totalorder %s142, %s145
      %p154 = scmp.eq.s32.totalorder %s23, 1
      %p155 = por %p153, %p154
      %p156 = scmp.ne.s32.totalorder %s145, %s146
      %p157 = scmp.eq.s32.totalorder %s23, 0
      %p158 = por %p156, %p157
      %p159 = scmp.ne.s32.totalorder %s145, %s146
      %p160 = scmp.eq.s32.totalorder %s24, 1
      %p161 = por %p159, %p160
      %p163 = scmp.ne.s32.totalorder %s146, %s162
      %p164 = scmp.eq.s32.totalorder %s24, 0
      %p165 = por %p163, %p164
      %p166 = scmp.le.s32.totalorder 1, %s18
      %p167 = scmp.lt.s32.totalorder %s18, 3
      %p168 = pnand %p166, %p167
      %p169 = pneg %p168
      // Predicated region
      $region9: #{tpu_custom_call.1} parent=5 // pred_check
        _
      $region10: #{tpu_custom_call.1} parent=5 // pred_check_branch
        %171 = sbr.rel (%p168) target = $region12
      $region11: #{tpu_custom_call.1} parent=5 // pred_region
        %s172 = ssub.s32 %s18, 1
      $region12: #{tpu_custom_call.1} parent=5 // pred_fallthru
        _
      %p173 = scmp.lt.s32.totalorder %s18, 2
      // Predicated region
      $region13: #{tpu_custom_call.1} parent=5 // pred_check
        %p174 = pneg %p173
      $region14: #{tpu_custom_call.1} parent=5 // pred_check_branch
        %176 = sbr.rel (%p174) target = $region16
      $region15: #{tpu_custom_call.1} parent=5 // pred_region
        // Predicated region
        $region17: #{tpu_custom_call.1} parent=15 // pred_check
          %p177 = pneg %p52
        $region18: #{tpu_custom_call.1} parent=15 // pred_check_branch
          %179 = sbr.rel (%p177) target = $region20
        $region19: #{tpu_custom_call.1} parent=15 // pred_region
          %s180 = sand.u32 %s42, 1
          %s181 = scalar_lea.sflag [#allocation3], %s180
          %s182 = sand.u32 %s42, 1
          %s183 = smul.addr %s182, 128
          %s184 = scalar_lea.vmem [#allocation2], %s183
          %s185 = smul.u32 4, %s25
          %s186 = smul.u32 4, %s26
          %s188 = ssub.s32 2048, 2048
          %189 = vsyncadd %s181, %s188
          %s190 = smul.addr %s185, 8
          %s191 = sadd.s32 %s186, %s190
          %s192 = smul.addr %s191, 128
          %s193 = scalar_lea.hbm %s0, %s192
          %s194 = sshll.u32 %s184, 4
          %s195 = int_to_ptr.vmem [resolvable:$true] %s194
          %200 = dma.hbm_to_vmem [thread:$0]  %s193, 2048, %s195, %s181, 1024, 512, 32
        $region20: #{tpu_custom_call.1} parent=15 // pred_fallthru
          _
        // Predicated region
        $region21: #{tpu_custom_call.1} parent=15 // pred_check
          %p201 = pneg %p88
        $region22: #{tpu_custom_call.1} parent=15 // pred_check_branch
          %203 = sbr.rel (%p201) target = $region24
        $region23: #{tpu_custom_call.1} parent=15 // pred_region
          %s204 = sand.u32 %s18, 1
          %s205 = scalar_lea.sflag [#allocation6], %s204
          %s206 = sand.u32 %s78, 1
          %s207 = smul.addr %s206, 32
          %s208 = scalar_lea.vmem [#allocation5], %s207
          %s209 = smul.u32 %s26, 4
          %s210 = ssub.s32 %s209, 1
          %p211 = scmp.gt.s32.totalorder %s210, 0
          %s212 = scalar_select %p211, %s210, 0
          %s213 = smul.u32 4, %s25
          %s215 = ssub.s32 512, 512
          %216 = vsyncadd %s205, %s215
          %s217 = smul.addr %s213, 8
          %s218 = sadd.s32 %s212, %s217
          %s219 = smul.addr %s218, 128
          %s220 = scalar_lea.hbm %s1, %s219
          %s221 = sshll.u32 %s208, 4
          %s222 = int_to_ptr.vmem [resolvable:$true] %s221
          %227 = dma.hbm_to_vmem [thread:$0]  %s220, 512, %s222, %s205, 1024, 128, 8
        $region24: #{tpu_custom_call.1} parent=15 // pred_fallthru
          _
        // Predicated region
        $region25: #{tpu_custom_call.1} parent=15 // pred_check
          %p228 = pneg %p124
        $region26: #{tpu_custom_call.1} parent=15 // pred_check_branch
          %230 = sbr.rel (%p228) target = $region28
        $region27: #{tpu_custom_call.1} parent=15 // pred_region
          %s231 = sand.u32 %s18, 1
          %s232 = scalar_lea.sflag [#allocation6], %s231
          %s233 = sand.u32 %s114, 1
          %s234 = smul.addr %s233, 32
          %s235 = scalar_lea.vmem [#allocation7], %s234
          %s236 = smul.u32 %s26, 4
          %s237 = sadd.s32 %s236, 4
          %p238 = scmp.lt.s32.totalorder %s237, 7
          %s239 = scalar_select %p238, %s237, 7
          %s240 = smul.u32 4, %s25
          %s242 = ssub.s32 512, 512
          %243 = vsyncadd %s232, %s242
          %s244 = smul.addr %s240, 8
          %s245 = sadd.s32 %s239, %s244
          %s246 = smul.addr %s245, 128
          %s247 = scalar_lea.hbm %s2, %s246
          %s248 = sshll.u32 %s235, 4
          %s249 = int_to_ptr.vmem [resolvable:$true] %s248
          %254 = dma.hbm_to_vmem [thread:$0]  %s247, 512, %s249, %s232, 1024, 128, 8
        $region28: #{tpu_custom_call.1} parent=15 // pred_fallthru
          _
      $region16: #{tpu_custom_call.1} parent=5 // pred_fallthru
        _
      %p255 = scmp.le.s32.totalorder 1, %s18
      %p256 = scmp.lt.s32.totalorder %s18, 3
      %p257 = pnand %p255, %p256
      %p258 = pneg %p257
      // Predicated region
      $region29: #{tpu_custom_call.1} parent=5 // pred_check
        _
      $region30: #{tpu_custom_call.1} parent=5 // pred_check_branch
        %260 = sbr.rel (%p257) target = $region32
      $region31: #{tpu_custom_call.1} parent=5 // pred_region
        %s261 = ssub.s32 %s18, 1
        %s262 = sand.u32 %s45, 1
        %s263 = scalar_lea.sflag [#allocation3], %s262
        %s264 = sand.u32 %s45, 1
        %s265 = smul.addr %s264, 128
        %s266 = scalar_lea.vmem [#allocation2], %s265
        // Predicated region
        $region33: #{tpu_custom_call.1} parent=31 // pred_check
          %p267 = pneg %p58
        $region34: #{tpu_custom_call.1} parent=31 // pred_check_branch
          %269 = sbr.rel (%p267) target = $region36
        $region35: #{tpu_custom_call.1} parent=31 // pred_region
          %270 = dma.done %s263, 2048
        $region36: #{tpu_custom_call.1} parent=31 // pred_fallthru
          _
        %s271 = sand.u32 %s23, 1
        %s272 = scalar_lea.sflag [#allocation6], %s271
        %s273 = sand.u32 %s81, 1
        %s274 = smul.addr %s273, 32
        %s275 = scalar_lea.vmem [#allocation5], %s274
        // Predicated region
        $region37: #{tpu_custom_call.1} parent=31 // pred_check
          %p276 = pneg %p94
        $region38: #{tpu_custom_call.1} parent=31 // pred_check_branch
          %278 = sbr.rel (%p276) target = $region40
        $region39: #{tpu_custom_call.1} parent=31 // pred_region
          %279 = dma.done %s272, 512
        $region40: #{tpu_custom_call.1} parent=31 // pred_fallthru
          _
        %s280 = sand.u32 %s23, 1
        %s281 = scalar_lea.sflag [#allocation6], %s280
        %s282 = sand.u32 %s117, 1
        %s283 = smul.addr %s282, 32
        %s284 = scalar_lea.vmem [#allocation7], %s283
        // Predicated region
        $region41: #{tpu_custom_call.1} parent=31 // pred_check
          %p285 = pneg %p130
        $region42: #{tpu_custom_call.1} parent=31 // pred_check_branch
          %287 = sbr.rel (%p285) target = $region44
        $region43: #{tpu_custom_call.1} parent=31 // pred_region
          %288 = dma.done %s281, 512
        $region44: #{tpu_custom_call.1} parent=31 // pred_fallthru
          _
        %s289 = sand.u32 %s45, 1
        %s290 = scalar_lea.sflag [#allocation3], %s289
        %s291 = sand.u32 %s45, 1
        %s292 = smul.addr %s291, 128
        %s293 = scalar_lea.vmem [#allocation2], %s292
        %p294 = pneg %p58
        %p295 = pneg %p55
        %s296 = sand.u32 %s23, 1
        %s297 = scalar_lea.sflag [#allocation6], %s296
        %s298 = sand.u32 %s81, 1
        %s299 = smul.addr %s298, 32
        %s300 = scalar_lea.vmem [#allocation5], %s299
        %p301 = pneg %p94
        %p302 = pneg %p91
        %s303 = sand.u32 %s23, 1
        %s304 = scalar_lea.sflag [#allocation6], %s303
        %s305 = sand.u32 %s117, 1
        %s306 = smul.addr %s305, 32
        %s307 = scalar_lea.vmem [#allocation7], %s306
        %p308 = pneg %p130
        %p309 = pneg %p127
        %p310 = pneg %p158
        %p311 = pneg %p155
        %s312 = sand.u32 %s145, 1
        %s313 = scalar_lea.sflag [#allocation4], %s312
        %s314 = sand.u32 %s145, 1
        %s315 = smul.addr %s314, 128
        %s316 = scalar_lea.vmem [#allocation8], %s315
        %s317 = smul.u32 4, %s27
        %s318 = smul.u32 4, %s28
        %s319 = smul.u32 %s28, 4
        %s320 = ssub.s32 %s319, 1
        %p321 = scmp.gt.s32.totalorder %s320, 0
        %s322 = scalar_select %p321, %s320, 0
        %s323 = smul.u32 4, %s27
        %s324 = smul.u32 %s28, 4
        %s325 = sadd.s32 %s324, 4
        %p326 = scmp.lt.s32.totalorder %s325, 7
        %s327 = scalar_select %p326, %s325, 7
        %s328 = smul.u32 4, %s27
        %s329 = smul.u32 4, %s27
        %s330 = smul.u32 4, %s28
        %s331 = smul.u32 %s28, 512
        %v332 = vld [vmem:[%s266] sm:$0xff]
        %v333 = vld [vmem:[%s266 + $0x8] sm:$0xff]
        %v334 = vld [vmem:[%s266 + $0x10] sm:$0xff]
        %v335 = vld [vmem:[%s266 + $0x18] sm:$0xff]
        %v336 = vld [vmem:[%s266 + $0x20] sm:$0xff]
        %v337 = vld [vmem:[%s266 + $0x28] sm:$0xff]
        %v338 = vld [vmem:[%s266 + $0x30] sm:$0xff]
        %v339 = vld [vmem:[%s266 + $0x38] sm:$0xff]
        %v340 = vld [vmem:[%s266 + $0x40] sm:$0xff]
        %v341 = vld [vmem:[%s266 + $0x48] sm:$0xff]
        %v342 = vld [vmem:[%s266 + $0x50] sm:$0xff]
        %v343 = vld [vmem:[%s266 + $0x58] sm:$0xff]
        %v344 = vld [vmem:[%s266 + $0x60] sm:$0xff]
        %v345 = vld [vmem:[%s266 + $0x68] sm:$0xff]
        %v346 = vld [vmem:[%s266 + $0x70] sm:$0xff]
        %v347 = vld [vmem:[%s266 + $0x78] sm:$0xff]
        %v348 = vlaneseq
        %v349 = vand.u32 %v348, 127
        %v350 = vadd.s32 %v349, 128
        %v351 = vadd.s32 %v349, 256
        %v352 = vadd.s32 %v349, 384
        %v353 = vstv %s331
        %v354 = vadd.s32 %v353, %v349
        %v355 = vadd.s32 %v353, %v350
        %v356 = vadd.s32 %v353, %v351
        %v357 = vadd.s32 %v353, %v352
        %vm358 = vcmp.lt.s32.totalorder %v354, 1000
        %vm359 = vcmp.lt.s32.totalorder %v355, 1000
        %vm360 = vcmp.lt.s32.totalorder %v356, 1000
        %vm361 = vcmp.lt.s32.totalorder %v357, 1000
        %v362 = vsel %vm358, %v332, 0.0
        %v363 = vsel %vm359, %v333, 0.0
        %v364 = vsel %vm360, %v334, 0.0
        %v365 = vsel %vm361, %v335, 0.0
        %v366 = vsel %vm358, %v336, 0.0
        %v367 = vsel %vm359, %v337, 0.0
        %v368 = vsel %vm360, %v338, 0.0
        %v369 = vsel %vm361, %v339, 0.0
        %v370 = vsel %vm358, %v340, 0.0
        %v371 = vsel %vm359, %v341, 0.0
        %v372 = vsel %vm360, %v342, 0.0
        %v373 = vsel %vm361, %v343, 0.0
        %v374 = vsel %vm358, %v344, 0.0
        %v375 = vsel %vm359, %v345, 0.0
        %v376 = vsel %vm360, %v346, 0.0
        %v377 = vsel %vm361, %v347, 0.0
        %v378 = vld [vmem:[%s275] sm:$0xff]
        %v379 = vld [vmem:[%s275 + $0x8] sm:$0xff]
        %v380 = vld [vmem:[%s275 + $0x10] sm:$0xff]
        %v381 = vld [vmem:[%s275 + $0x18] sm:$0xff]
        %s382 = ssub.s32 %s331, 128
        %v383 = vstv %s382
        %v384 = vadd.s32 %v383, %v349
        %vm385 = vcmp.ge.s32.totalorder %v384, 0
        %v386 = vsel %vm385, %v378, 0.0
        %v387 = vsel %vm385, %v379, 0.0
        %v388 = vsel %vm385, %v380, 0.0
        %v389 = vsel %vm385, %v381, 0.0
        %v390 = vld [vmem:[%s284] sm:$0xff]
        %v391 = vld [vmem:[%s284 + $0x8] sm:$0xff]
        %v392 = vld [vmem:[%s284 + $0x10] sm:$0xff]
        %v393 = vld [vmem:[%s284 + $0x18] sm:$0xff]
        %s394 = sadd.s32 %s331, 512
        %v395 = vstv %s394
        %v396 = vadd.s32 %v395, %v349
        %vm397 = vcmp.lt.s32.totalorder %v396, 1000
        %v398 = vsel %vm397, %v390, 0.0
        %v399 = vsel %vm397, %v391, 0.0
        %v400 = vsel %vm397, %v392, 0.0
        %v401 = vsel %vm397, %v393, 0.0
        %v402 = vmul.f32 %v386, 0.01401026
        %v403 = vmul.f32 %v362, 0.01401026
        %v404 = vmul.f32 %v363, 0.01401026
        %v405 = vmul.f32 %v364, 0.01401026
        %v406 = vmul.f32 %v365, 0.01401026
        %v407 = vmul.f32 %v387, 0.01401026
        %v408 = vmul.f32 %v366, 0.01401026
        %v409 = vmul.f32 %v367, 0.01401026
        %v410 = vmul.f32 %v368, 0.01401026
        %v411 = vmul.f32 %v369, 0.01401026
        %v412 = vmul.f32 %v388, 0.01401026
        %v413 = vmul.f32 %v370, 0.01401026
        %v414 = vmul.f32 %v371, 0.01401026
        %v415 = vmul.f32 %v372, 0.01401026
        %v416 = vmul.f32 %v373, 0.01401026
        %v417 = vmul.f32 %v389, 0.01401026
        %v418 = vmul.f32 %v374, 0.01401026
        %v419 = vmul.f32 %v375, 0.01401026
        %v420 = vmul.f32 %v376, 0.01401026
        %v421 = vmul.f32 %v377, 0.01401026
        %v422 = vmul.f32 %v386, 0.10352259
        %v423 = vmul.f32 %v362, 0.10352259
        %v424 = vmul.f32 %v363, 0.10352259
        %v425 = vmul.f32 %v364, 0.10352259
        %v426 = vmul.f32 %v365, 0.10352259
        %v427 = vmul.f32 %v387, 0.10352259
        %v428 = vmul.f32 %v366, 0.10352259
        %v429 = vmul.f32 %v367, 0.10352259
        %v430 = vmul.f32 %v368, 0.10352259
        %v431 = vmul.f32 %v369, 0.10352259
        %v432 = vmul.f32 %v388, 0.10352259
        %v433 = vmul.f32 %v370, 0.10352259
        %v434 = vmul.f32 %v371, 0.10352259
        %v435 = vmul.f32 %v372, 0.10352259
        %v436 = vmul.f32 %v373, 0.10352259
        %v437 = vmul.f32 %v389, 0.10352259
        %v438 = vmul.f32 %v374, 0.10352259
        %v439 = vmul.f32 %v375, 0.10352259
        %v440 = vmul.f32 %v376, 0.10352259
        %v441 = vmul.f32 %v377, 0.10352259
        %462 = vrot.lane.b32.xlu0 %v422, 127
        %v463 = vpop.permute.xlu0 %462
        %464 = vrot.lane.b32.xlu0 %v423, 127
        %v465 = vpop.permute.xlu0 %464
        %466 = vrot.lane.b32.xlu0 %v424, 127
        %v467 = vpop.permute.xlu0 %466
        %468 = vrot.lane.b32.xlu0 %v425, 127
        %v469 = vpop.permute.xlu0 %468
        %470 = vrot.lane.b32.xlu0 %v426, 127
        %v471 = vpop.permute.xlu0 %470
        %472 = vrot.lane.b32.xlu0 %v427, 127
        %v473 = vpop.permute.xlu0 %472
        %474 = vrot.lane.b32.xlu0 %v428, 127
        %v475 = vpop.permute.xlu0 %474
        %476 = vrot.lane.b32.xlu0 %v429, 127
        %v477 = vpop.permute.xlu0 %476
        %478 = vrot.lane.b32.xlu0 %v430, 127
        %v479 = vpop.permute.xlu0 %478
        %480 = vrot.lane.b32.xlu0 %v431, 127
        %v481 = vpop.permute.xlu0 %480
        %482 = vrot.lane.b32.xlu0 %v432, 127
        %v483 = vpop.permute.xlu0 %482
        %484 = vrot.lane.b32.xlu0 %v433, 127
        %v485 = vpop.permute.xlu0 %484
        %486 = vrot.lane.b32.xlu0 %v434, 127
        %v487 = vpop.permute.xlu0 %486
        %488 = vrot.lane.b32.xlu0 %v435, 127
        %v489 = vpop.permute.xlu0 %488
        %490 = vrot.lane.b32.xlu0 %v436, 127
        %v491 = vpop.permute.xlu0 %490
        %492 = vrot.lane.b32.xlu0 %v437, 127
        %v493 = vpop.permute.xlu0 %492
        %494 = vrot.lane.b32.xlu0 %v438, 127
        %v495 = vpop.permute.xlu0 %494
        %496 = vrot.lane.b32.xlu0 %v439, 127
        %v497 = vpop.permute.xlu0 %496
        %498 = vrot.lane.b32.xlu0 %v440, 127
        %v499 = vpop.permute.xlu0 %498
        %500 = vrot.lane.b32.xlu0 %v441, 127
        %v501 = vpop.permute.xlu0 %500
        %vm502 = vcmask 1039360
        %v503 = vsel %vm502, %v463, %v465
        %v504 = vsel %vm502, %v465, %v467
        %v505 = vsel %vm502, %v467, %v469
        %v506 = vsel %vm502, %v469, %v471
        %v507 = vsel %vm502, %v473, %v475
        %v508 = vsel %vm502, %v475, %v477
        %v509 = vsel %vm502, %v477, %v479
        %v510 = vsel %vm502, %v479, %v481
        %v511 = vsel %vm502, %v483, %v485
        %v512 = vsel %vm502, %v485, %v487
        %v513 = vsel %vm502, %v487, %v489
        %v514 = vsel %vm502, %v489, %v491
        %v515 = vsel %vm502, %v493, %v495
        %v516 = vsel %vm502, %v495, %v497
        %v517 = vsel %vm502, %v497, %v499
        %v518 = vsel %vm502, %v499, %v501
        %v539 = vadd.f32 %v402, %v503
        %v540 = vadd.f32 %v403, %v504
        %v541 = vadd.f32 %v404, %v505
        %v542 = vadd.f32 %v405, %v506
        %v543 = vadd.f32 %v406, %v471
        %v544 = vadd.f32 %v407, %v507
        %v545 = vadd.f32 %v408, %v508
        %v546 = vadd.f32 %v409, %v509
        %v547 = vadd.f32 %v410, %v510
        %v548 = vadd.f32 %v411, %v481
        %v549 = vadd.f32 %v412, %v511
        %v550 = vadd.f32 %v413, %v512
        %v551 = vadd.f32 %v414, %v513
        %v552 = vadd.f32 %v415, %v514
        %v553 = vadd.f32 %v416, %v491
        %v554 = vadd.f32 %v417, %v515
        %v555 = vadd.f32 %v418, %v516
        %v556 = vadd.f32 %v419, %v517
        %v557 = vadd.f32 %v420, %v518
        %v558 = vadd.f32 %v421, %v501
        %v559 = vmul.f32 %v362, 0.76493424
        %v560 = vmul.f32 %v363, 0.76493424
        %v561 = vmul.f32 %v364, 0.76493424
        %v562 = vmul.f32 %v365, 0.76493424
        %v563 = vmul.f32 %v366, 0.76493424
        %v564 = vmul.f32 %v367, 0.76493424
        %v565 = vmul.f32 %v368, 0.76493424
        %v566 = vmul.f32 %v369, 0.76493424
        %v567 = vmul.f32 %v370, 0.76493424
        %v568 = vmul.f32 %v371, 0.76493424
        %v569 = vmul.f32 %v372, 0.76493424
        %v570 = vmul.f32 %v373, 0.76493424
        %v571 = vmul.f32 %v374, 0.76493424
        %v572 = vmul.f32 %v375, 0.76493424
        %v573 = vmul.f32 %v376, 0.76493424
        %v574 = vmul.f32 %v377, 0.76493424
        %591 = vrot.lane.b32.xlu0 %v559, 126
        %v592 = vpop.permute.xlu0 %591
        %593 = vrot.lane.b32.xlu0 %v560, 126
        %v594 = vpop.permute.xlu0 %593
        %595 = vrot.lane.b32.xlu0 %v561, 126
        %v596 = vpop.permute.xlu0 %595
        %597 = vrot.lane.b32.xlu0 %v562, 126
        %v598 = vpop.permute.xlu0 %597
        %599 = vrot.lane.b32.xlu0 %v563, 126
        %v600 = vpop.permute.xlu0 %599
        %601 = vrot.lane.b32.xlu0 %v564, 126
        %v602 = vpop.permute.xlu0 %601
        %603 = vrot.lane.b32.xlu0 %v565, 126
        %v604 = vpop.permute.xlu0 %603
        %605 = vrot.lane.b32.xlu0 %v566, 126
        %v606 = vpop.permute.xlu0 %605
        %607 = vrot.lane.b32.xlu0 %v567, 126
        %v608 = vpop.permute.xlu0 %607
        %609 = vrot.lane.b32.xlu0 %v568, 126
        %v610 = vpop.permute.xlu0 %609
        %611 = vrot.lane.b32.xlu0 %v569, 126
        %v612 = vpop.permute.xlu0 %611
        %613 = vrot.lane.b32.xlu0 %v570, 126
        %v614 = vpop.permute.xlu0 %613
        %615 = vrot.lane.b32.xlu0 %v571, 126
        %v616 = vpop.permute.xlu0 %615
        %617 = vrot.lane.b32.xlu0 %v572, 126
        %v618 = vpop.permute.xlu0 %617
        %619 = vrot.lane.b32.xlu0 %v573, 126
        %v620 = vpop.permute.xlu0 %619
        %621 = vrot.lane.b32.xlu0 %v574, 126
        %v622 = vpop.permute.xlu0 %621
        %vm623 = vcmask 1031168
        %v624 = vsel %vm623, %v592, %v594
        %v625 = vsel %vm623, %v594, %v596
        %v626 = vsel %vm623, %v596, %v598
        %v627 = vsel %vm623, %v600, %v602
        %v628 = vsel %vm623, %v602, %v604
        %v629 = vsel %vm623, %v604, %v606
        %v630 = vsel %vm623, %v608, %v610
        %v631 = vsel %vm623, %v610, %v612
        %v632 = vsel %vm623, %v612, %v614
        %v633 = vsel %vm623, %v616, %v618
        %v634 = vsel %vm623, %v618, %v620
        %v635 = vsel %vm623, %v620, %v622
        %v656 = vadd.f32 %v539, %v592
        %v657 = vadd.f32 %v540, %v624
        %v658 = vadd.f32 %v541, %v625
        %v659 = vadd.f32 %v542, %v626
        %v660 = vadd.f32 %v543, %v598
        %v661 = vadd.f32 %v544, %v600
        %v662 = vadd.f32 %v545, %v627
        %v663 = vadd.f32 %v546, %v628
        %v664 = vadd.f32 %v547, %v629
        %v665 = vadd.f32 %v548, %v606
        %v666 = vadd.f32 %v549, %v608
        %v667 = vadd.f32 %v550, %v630
        %v668 = vadd.f32 %v551, %v631
        %v669 = vadd.f32 %v552, %v632
        %v670 = vadd.f32 %v553, %v614
        %v671 = vadd.f32 %v554, %v616
        %v672 = vadd.f32 %v555, %v633
        %v673 = vadd.f32 %v556, %v634
        %v674 = vadd.f32 %v557, %v635
        %v675 = vadd.f32 %v558, %v622
        %v676 = vmul.f32 %v398, 0.10352259
        %v677 = vmul.f32 %v399, 0.10352259
        %v678 = vmul.f32 %v400, 0.10352259
        %v679 = vmul.f32 %v401, 0.10352259
        %684 = vrot.lane.b32.xlu0 %v423, 125
        %v685 = vpop.permute.xlu0 %684
        %686 = vrot.lane.b32.xlu0 %v424, 125
        %v687 = vpop.permute.xlu0 %686
        %688 = vrot.lane.b32.xlu0 %v425, 125
        %v689 = vpop.permute.xlu0 %688
        %690 = vrot.lane.b32.xlu0 %v426, 125
        %v691 = vpop.permute.xlu0 %690
        %692 = vrot.lane.b32.xlu0 %v676, 125
        %v693 = vpop.permute.xlu0 %692
        %694 = vrot.lane.b32.xlu0 %v428, 125
        %v695 = vpop.permute.xlu0 %694
        %696 = vrot.lane.b32.xlu0 %v429, 125
        %v697 = vpop.permute.xlu0 %696
        %698 = vrot.lane.b32.xlu0 %v430, 125
        %v699 = vpop.permute.xlu0 %698
        %700 = vrot.lane.b32.xlu0 %v431, 125
        %v701 = vpop.permute.xlu0 %700
        %702 = vrot.lane.b32.xlu0 %v677, 125
        %v703 = vpop.permute.xlu0 %702
        %704 = vrot.lane.b32.xlu0 %v433, 125
        %v705 = vpop.permute.xlu0 %704
        %706 = vrot.lane.b32.xlu0 %v434, 125
        %v707 = vpop.permute.xlu0 %706
        %708 = vrot.lane.b32.xlu0 %v435, 125
        %v709 = vpop.permute.xlu0 %708
        %710 = vrot.lane.b32.xlu0 %v436, 125
        %v711 = vpop.permute.xlu0 %710
        %712 = vrot.lane.b32.xlu0 %v678, 125
        %v713 = vpop.permute.xlu0 %712
        %714 = vrot.lane.b32.xlu0 %v438, 125
        %v715 = vpop.permute.xlu0 %714
        %716 = vrot.lane.b32.xlu0 %v439, 125
        %v717 = vpop.permute.xlu0 %716
        %718 = vrot.lane.b32.xlu0 %v440, 125
        %v719 = vpop.permute.xlu0 %718
        %720 = vrot.lane.b32.xlu0 %v441, 125
        %v721 = vpop.permute.xlu0 %720
        %722 = vrot.lane.b32.xlu0 %v679, 125
        %v723 = vpop.permute.xlu0 %722
        %vm724 = vcmask 1022976
        %v725 = vsel %vm724, %v685, %v687
        %v726 = vsel %vm724, %v687, %v689
        %v727 = vsel %vm724, %v689, %v691
        %v728 = vsel %vm724, %v691, %v693
        %v729 = vsel %vm724, %v695, %v697
        %v730 = vsel %vm724, %v697, %v699
        %v731 = vsel %vm724, %v699, %v701
        %v732 = vsel %vm724, %v701, %v703
        %v733 = vsel %vm724, %v705, %v707
        %v734 = vsel %vm724, %v707, %v709
        %v735 = vsel %vm724, %v709, %v711
        %v736 = vsel %vm724, %v711, %v713
        %v737 = vsel %vm724, %v715, %v717
        %v738 = vsel %vm724, %v717, %v719
        %v739 = vsel %vm724, %v719, %v721
        %v740 = vsel %vm724, %v721, %v723
        %v761 = vadd.f32 %v656, %v685
        %v762 = vadd.f32 %v657, %v725
        %v763 = vadd.f32 %v658, %v726
        %v764 = vadd.f32 %v659, %v727
        %v765 = vadd.f32 %v660, %v728
        %v766 = vadd.f32 %v661, %v695
        %v767 = vadd.f32 %v662, %v729
        %v768 = vadd.f32 %v663, %v730
        %v769 = vadd.f32 %v664, %v731
        %v770 = vadd.f32 %v665, %v732
        %v771 = vadd.f32 %v666, %v705
        %v772 = vadd.f32 %v667, %v733
        %v773 = vadd.f32 %v668, %v734
        %v774 = vadd.f32 %v669, %v735
        %v775 = vadd.f32 %v670, %v736
        %v776 = vadd.f32 %v671, %v715
        %v777 = vadd.f32 %v672, %v737
        %v778 = vadd.f32 %v673, %v738
        %v779 = vadd.f32 %v674, %v739
        %v780 = vadd.f32 %v675, %v740
        %v781 = vmul.f32 %v398, 0.01401026
        %v782 = vmul.f32 %v399, 0.01401026
        %v783 = vmul.f32 %v400, 0.01401026
        %v784 = vmul.f32 %v401, 0.01401026
        %805 = vrot.lane.b32.xlu0 %v403, 124
        %v806 = vpop.permute.xlu0 %805
        %807 = vrot.lane.b32.xlu0 %v404, 124
        %v808 = vpop.permute.xlu0 %807
        %809 = vrot.lane.b32.xlu0 %v405, 124
        %v810 = vpop.permute.xlu0 %809
        %811 = vrot.lane.b32.xlu0 %v406, 124
        %v812 = vpop.permute.xlu0 %811
        %813 = vrot.lane.b32.xlu0 %v781, 124
        %v814 = vpop.permute.xlu0 %813
        %815 = vrot.lane.b32.xlu0 %v408, 124
        %v816 = vpop.permute.xlu0 %815
        %817 = vrot.lane.b32.xlu0 %v409, 124
        %v818 = vpop.permute.xlu0 %817
        %819 = vrot.lane.b32.xlu0 %v410, 124
        %v820 = vpop.permute.xlu0 %819
        %821 = vrot.lane.b32.xlu0 %v411, 124
        %v822 = vpop.permute.xlu0 %821
        %823 = vrot.lane.b32.xlu0 %v782, 124
        %v824 = vpop.permute.xlu0 %823
        %825 = vrot.lane.b32.xlu0 %v413, 124
        %v826 = vpop.permute.xlu0 %825
        %827 = vrot.lane.b32.xlu0 %v414, 124
        %v828 = vpop.permute.xlu0 %827
        %829 = vrot.lane.b32.xlu0 %v415, 124
        %v830 = vpop.permute.xlu0 %829
        %831 = vrot.lane.b32.xlu0 %v416, 124
        %v832 = vpop.permute.xlu0 %831
        %833 = vrot.lane.b32.xlu0 %v783, 124
        %v834 = vpop.permute.xlu0 %833
        %835 = vrot.lane.b32.xlu0 %v418, 124
        %v836 = vpop.permute.xlu0 %835
        %837 = vrot.lane.b32.xlu0 %v419, 124
        %v838 = vpop.permute.xlu0 %837
        %839 = vrot.lane.b32.xlu0 %v420, 124
        %v840 = vpop.permute.xlu0 %839
        %841 = vrot.lane.b32.xlu0 %v421, 124
        %v842 = vpop.permute.xlu0 %841
        %843 = vrot.lane.b32.xlu0 %v784, 124
        %v844 = vpop.permute.xlu0 %843
        %vm845 = vcmask 1014784
        %v846 = vsel %vm845, %v806, %v808
        %v847 = vsel %vm845, %v808, %v810
        %v848 = vsel %vm845, %v810, %v812
        %v849 = vsel %vm845, %v812, %v814
        %v850 = vsel %vm845, %v816, %v818
        %v851 = vsel %vm845, %v818, %v820
        %v852 = vsel %vm845, %v820, %v822
        %v853 = vsel %vm845, %v822, %v824
        %v854 = vsel %vm845, %v826, %v828
        %v855 = vsel %vm845, %v828, %v830
        %v856 = vsel %vm845, %v830, %v832
        %v857 = vsel %vm845, %v832, %v834
        %v858 = vsel %vm845, %v836, %v838
        %v859 = vsel %vm845, %v838, %v840
        %v860 = vsel %vm845, %v840, %v842
        %v861 = vsel %vm845, %v842, %v844
        %v882 = vadd.f32 %v761, %v806
        %v883 = vadd.f32 %v762, %v846
        %v884 = vadd.f32 %v763, %v847
        %v885 = vadd.f32 %v764, %v848
        %v886 = vadd.f32 %v765, %v849
        %v887 = vadd.f32 %v766, %v816
        %v888 = vadd.f32 %v767, %v850
        %v889 = vadd.f32 %v768, %v851
        %v890 = vadd.f32 %v769, %v852
        %v891 = vadd.f32 %v770, %v853
        %v892 = vadd.f32 %v771, %v826
        %v893 = vadd.f32 %v772, %v854
        %v894 = vadd.f32 %v773, %v855
        %v895 = vadd.f32 %v774, %v856
        %v896 = vadd.f32 %v775, %v857
        %v897 = vadd.f32 %v776, %v836
        %v898 = vadd.f32 %v777, %v858
        %v899 = vadd.f32 %v778, %v859
        %v900 = vadd.f32 %v779, %v860
        %v901 = vadd.f32 %v780, %v861
        %922 = vrot.lane.b32.xlu0 %v882, 2
        %v923 = vpop.permute.xlu0 %922
        %924 = vrot.lane.b32.xlu0 %v883, 2
        %v925 = vpop.permute.xlu0 %924
        %926 = vrot.lane.b32.xlu0 %v884, 2
        %v927 = vpop.permute.xlu0 %926
        %928 = vrot.lane.b32.xlu0 %v885, 2
        %v929 = vpop.permute.xlu0 %928
        %930 = vrot.lane.b32.xlu0 %v886, 2
        %v931 = vpop.permute.xlu0 %930
        %932 = vrot.lane.b32.xlu0 %v887, 2
        %v933 = vpop.permute.xlu0 %932
        %934 = vrot.lane.b32.xlu0 %v888, 2
        %v935 = vpop.permute.xlu0 %934
        %936 = vrot.lane.b32.xlu0 %v889, 2
        %v937 = vpop.permute.xlu0 %936
        %938 = vrot.lane.b32.xlu0 %v890, 2
        %v939 = vpop.permute.xlu0 %938
        %940 = vrot.lane.b32.xlu0 %v891, 2
        %v941 = vpop.permute.xlu0 %940
        %942 = vrot.lane.b32.xlu0 %v892, 2
        %v943 = vpop.permute.xlu0 %942
        %944 = vrot.lane.b32.xlu0 %v893, 2
        %v945 = vpop.permute.xlu0 %944
        %946 = vrot.lane.b32.xlu0 %v894, 2
        %v947 = vpop.permute.xlu0 %946
        %948 = vrot.lane.b32.xlu0 %v895, 2
        %v949 = vpop.permute.xlu0 %948
        %950 = vrot.lane.b32.xlu0 %v896, 2
        %v951 = vpop.permute.xlu0 %950
        %952 = vrot.lane.b32.xlu0 %v897, 2
        %v953 = vpop.permute.xlu0 %952
        %954 = vrot.lane.b32.xlu0 %v898, 2
        %v955 = vpop.permute.xlu0 %954
        %956 = vrot.lane.b32.xlu0 %v899, 2
        %v957 = vpop.permute.xlu0 %956
        %958 = vrot.lane.b32.xlu0 %v900, 2
        %v959 = vpop.permute.xlu0 %958
        %960 = vrot.lane.b32.xlu0 %v901, 2
        %v961 = vpop.permute.xlu0 %960
        %vm962 = vcmask 15360
        %v963 = vsel %vm962, %v923, %v925
        %v964 = vsel %vm962, %v925, %v927
        %v965 = vsel %vm962, %v927, %v929
        %v966 = vsel %vm962, %v929, %v931
        %v967 = vsel %vm962, %v933, %v935
        %v968 = vsel %vm962, %v935, %v937
        %v969 = vsel %vm962, %v937, %v939
        %v970 = vsel %vm962, %v939, %v941
        %v971 = vsel %vm962, %v943, %v945
        %v972 = vsel %vm962, %v945, %v947
        %v973 = vsel %vm962, %v947, %v949
        %v974 = vsel %vm962, %v949, %v951
        %v975 = vsel %vm962, %v953, %v955
        %v976 = vsel %vm962, %v955, %v957
        %v977 = vsel %vm962, %v957, %v959
        %v978 = vsel %vm962, %v959, %v961
        %995 = vst [vmem:[%s316] sm:$0xff] %v963
        %996 = vst [vmem:[%s316 + $0x8] sm:$0xff] %v964
        %997 = vst [vmem:[%s316 + $0x10] sm:$0xff] %v965
        %998 = vst [vmem:[%s316 + $0x18] sm:$0xff] %v966
        %999 = vst [vmem:[%s316 + $0x20] sm:$0xff] %v967
        %1000 = vst [vmem:[%s316 + $0x28] sm:$0xff] %v968
        %1001 = vst [vmem:[%s316 + $0x30] sm:$0xff] %v969
        %1002 = vst [vmem:[%s316 + $0x38] sm:$0xff] %v970
        %1003 = vst [vmem:[%s316 + $0x40] sm:$0xff] %v971
        %1004 = vst [vmem:[%s316 + $0x48] sm:$0xff] %v972
        %1005 = vst [vmem:[%s316 + $0x50] sm:$0xff] %v973
        %1006 = vst [vmem:[%s316 + $0x58] sm:$0xff] %v974
        %1007 = vst [vmem:[%s316 + $0x60] sm:$0xff] %v975
        %1008 = vst [vmem:[%s316 + $0x68] sm:$0xff] %v976
        %1009 = vst [vmem:[%s316 + $0x70] sm:$0xff] %v977
        %1010 = vst [vmem:[%s316 + $0x78] sm:$0xff] %v978
        %s1011 = sand.u32 %s145, 1
        %s1012 = scalar_lea.sflag [#allocation4], %s1011
        %s1013 = sand.u32 %s145, 1
        %s1014 = smul.addr %s1013, 128
        %s1015 = scalar_lea.vmem [#allocation8], %s1014
        // Predicated region
        $region45: #{tpu_custom_call.1} parent=31 // pred_check
          %p1016 = pneg %p155
        $region46: #{tpu_custom_call.1} parent=31 // pred_check_branch
          %1018 = sbr.rel (%p1016) target = $region48
        $region47: #{tpu_custom_call.1} parent=31 // pred_region
          %s1019 = smul.u32 4, %s27
          %s1020 = smul.u32 4, %s28
          %s1022 = ssub.s32 2048, 2048
          %1023 = vsyncadd %s1012, %s1022
          %s1024 = smul.addr %s1019, 8
          %s1025 = sadd.s32 %s1020, %s1024
          %s1026 = smul.addr %s1025, 128
          %s1027 = scalar_lea.hbm %s3, %s1026
          %s1028 = sshll.u32 %s1015, 4
          %s1029 = int_to_ptr.vmem [resolvable:$true] %s1028
          %1034 = dma.vmem_to_hbm [thread:$0]  %s1029, 2048, %s1027, %s1012, 512, 1024, 32
        $region48: #{tpu_custom_call.1} parent=31 // pred_fallthru
          _
      $region32: #{tpu_custom_call.1} parent=5 // pred_fallthru
        _
      %p1035 = scmp.le.s32.totalorder 2, %s18
      // Predicated region
      $region49: #{tpu_custom_call.1} parent=5 // pred_check
        %p1036 = pneg %p1035
      $region50: #{tpu_custom_call.1} parent=5 // pred_check_branch
        %1038 = sbr.rel (%p1036) target = $region52
      $region51: #{tpu_custom_call.1} parent=5 // pred_region
        %s1039 = ssub.s32 %s18, 2
        // Predicated region
        $region53: #{tpu_custom_call.1} parent=51 // pred_check
          %p1040 = pneg %p161
        $region54: #{tpu_custom_call.1} parent=51 // pred_check_branch
          %1042 = sbr.rel (%p1040) target = $region56
        $region55: #{tpu_custom_call.1} parent=51 // pred_region
          %s1043 = sand.u32 %s146, 1
          %s1044 = scalar_lea.sflag [#allocation4], %s1043
          %s1045 = sand.u32 %s146, 1
          %s1046 = smul.addr %s1045, 128
          %s1047 = scalar_lea.vmem [#allocation8], %s1046
          %1048 = dma.done %s1044, 2048
        $region56: #{tpu_custom_call.1} parent=51 // pred_fallthru
          _
      $region52: #{tpu_custom_call.1} parent=5 // pred_fallthru
        _
    $region6: #{tpu_custom_call.1} parent=1 // loop_footer
      %s22 = sadd.s32 1, %s18
    $region7: #{tpu_custom_call.1} parent=1 // loop_footer_branch
      %17 = sbr.rel target = $region3
    $region8: #{tpu_custom_call.1} parent=1 // loop_exit
      _
    %1049 = vsyncpa [#allocation3], 1
    %s1050 = scalar_lea.sflag [#allocation3], 1
    %1051 = vsyncpa %s1050, 1
    %1052 = vsyncpa [#allocation6], 1
    %s1053 = scalar_lea.sflag [#allocation6], 1
    %1054 = vsyncpa %s1053, 1
    %1055 = vsyncpa [#allocation4], 1
    %s1056 = scalar_lea.sflag [#allocation4], 1
    %1057 = vsyncpa %s1056, 1

</llo_original>
